<compile_context>
chip_gen: v7x
topology: tpu7x:2x2x1
jax: 0.10.0
libtpu: 0.0.40
codegen_flags: <defaults>
</compile_context>

<pallas_src>
import functools

import jax
import jax.numpy as jnp
from jax import lax
from jax.experimental import pallas as pl
from jax.experimental.pallas import tpu as pltpu


def _tile_loss(x_raw, t_raw, *, L, G, binary_loss_type, compute_weights,
               alpha, gamma):
    """Per-tile loss on a (TB, G*L) folded block. t_raw is (TB, G) int32."""
    x = x_raw.astype(jnp.float32)                        # cast in-kernel
    TB, GL = x.shape
    t_f32 = t_raw.astype(jnp.float32)                    # (TB, G)

    lane = lax.broadcasted_iota(jnp.int32, (TB, GL), 1)

    sel = None      # (G, GL) one-hot segment selector (folded case only)
    sel_t = None    # (GL, G) its transpose, built directly (no runtime xpose)
    if G == 1:
        col_f = lane.astype(jnp.float32)                 # (TB, L)
        t_b = t_f32                                      # (TB, 1) broadcasts
    else:
        # Folded case: L is a power of two (128 % L == 0) -> bit ops.
        log2_l = L.bit_length() - 1
        col_f = (lane & (L - 1)).astype(jnp.float32)     # position within segment
        gi = lax.broadcasted_iota(jnp.int32, (G, GL), 0)
        gj = lax.broadcasted_iota(jnp.int32, (G, GL), 1)
        sel = jnp.where((gj >> log2_l) == gi, 1.0, 0.0)          # (G, GL)
        tj = lax.broadcasted_iota(jnp.int32, (GL, G), 0)
        tg = lax.broadcasted_iota(jnp.int32, (GL, G), 1)
        sel_t = jnp.where((tj >> log2_l) == tg, 1.0, 0.0)        # (GL, G)
        # Broadcast per-row targets across their L-lane segment via MXU.
        t_b = jnp.dot(t_f32, sel, preferred_element_type=jnp.float32)  # (TB, GL)

    # Thermometer label OneHotLabels[target]: y = 1 iff col < target.
    y = jnp.where(col_f < t_b, 1.0, 0.0)

    # BCEWithLogitsLoss(reduction='none'), numerically stable form:
    #   loss = max(x, 0) - x*y + log(1 + exp(-|x|))
    result = jnp.maximum(x, 0.0) - x * y + jnp.log1p(jnp.exp(-jnp.abs(x)))

    if binary_loss_type == "focal":
        pt = jnp.exp(-result)
        one_minus_pt = 1.0 - pt
        if gamma == 2.0:
            focal = one_minus_pt * one_minus_pt          # avoid pow -> EUP log+exp
        else:
            focal = one_minus_pt ** gamma
        result = alpha * focal * result

    if compute_weights:
        pos = jnp.where(x > 0.0, 1.0, 0.0)
        if G == 1:
            est_b = jnp.sum(pos, axis=1, keepdims=True)                   # (TB, 1)
        else:
            # Segmented per-original-row count and broadcast back to its lanes
            # via two tiny selector matmuls on the otherwise-idle MXU.
            est_seg = jnp.dot(pos, sel_t, preferred_element_type=jnp.float32)  # (TB, G)
            est_b = jnp.dot(est_seg, sel, preferred_element_type=jnp.float32)  # (TB, GL)
        err = jnp.abs(est_b - t_b)
        w = jnp.minimum(err + 1.0, 7.0)
        result = w * result

    return result


def _wbce_tile_kernel(x_ref, t_ref, out_ref, *, L, G, binary_loss_type,
                      compute_weights, alpha, gamma):
    result = _tile_loss(x_ref[...], t_ref[...], L=L, G=G,
                        binary_loss_type=binary_loss_type,
                        compute_weights=compute_weights,
                        alpha=alpha, gamma=gamma)
    out_ref[...] = result.astype(out_ref.dtype)


def _wbce_sum_kernel(x_ref, t_ref, out_ref, *, L, G, n_valid_rows,
                     binary_loss_type, compute_weights, alpha, gamma):
    """Fused sum reduction: (1,1) output block resident across the grid."""
    i = pl.program_id(0)

    @pl.when(i == 0)
    def _():
        out_ref[...] = jnp.zeros_like(out_ref)

    result = _tile_loss(x_ref[...], t_ref[...], L=L, G=G,
                        binary_loss_type=binary_loss_type,
                        compute_weights=compute_weights,
                        alpha=alpha, gamma=gamma)
    TB, GL = result.shape

    # Mask out rows that came from batch padding (original row index >= B).
    r = lax.broadcasted_iota(jnp.int32, (TB, GL), 0)
    folded_row = i * TB + r
    if G > 1:
        log2_l = L.bit_length() - 1
        lane = lax.broadcasted_iota(jnp.int32, (TB, GL), 1)
        orig_row = folded_row * G + (lane >> log2_l)
    else:
        orig_row = folded_row
    masked = jnp.where(orig_row < n_valid_rows, result, 0.0)

    partial_rows = jnp.sum(masked, axis=1, keepdims=True)         # (TB, 1)
    out_ref[...] += jnp.sum(partial_rows, axis=0, keepdims=True)  # (1, 1)


class WeightedBinaryCrossEntropyLoss:
    """JAX/Pallas re-implementation of the PyTorch module's forward pass."""

    def __init__(self, num_labels, reduction="None", binary_loss_type="BCE"):
        self.num_labels = int(num_labels)
        self.reduction = reduction
        self.binary_loss_type = binary_loss_type.lower()
        self.alpha = 0.5
        self.gamma = 2.0

    def __call__(self, logits, target, compute_weights=False, weights=None):
        # `weights` is accepted for signature parity; the original forward
        # overwrites it with None before use, so it is ignored here as well.
        B, L = logits.shape
        assert L == self.num_labels

        # Lane folding: pack G rows into one 128-lane-dense row when L | 128.
        if L <= 128 and 128 % L == 0:
            G = 128 // L
        else:
            G = 1            # fallback: unfolded layout (correct, lane-sparse if L<128)
        GL = G * L

        Bf = -(-B // G)                                    # folded rows needed
        # ~2 MiB per input buffer -> ~8 MiB with in/out double buffering.
        rows = max(8, min(1024, (2 * 1024 * 1024) // (GL * 4)))
        rows = (rows // 8) * 8
        tbf = min(Bf, rows)
        num_tiles = -(-Bf // tbf)
        bf_pad = num_tiles * tbf
        b_pad = bf_pad * G

        x = logits                                         # keep native dtype
        tgt = target.astype(jnp.int32)
        if b_pad != B:
            x = jnp.pad(x, ((0, b_pad - B), (0, 0)))
            tgt = jnp.pad(tgt, (0, b_pad - B))
        x_f = x.reshape(bf_pad, GL)                        # pure metadata reshape
        t_f = tgt.reshape(bf_pad, G)

        static = dict(L=L, G=G, binary_loss_type=self.binary_loss_type,
                      compute_weights=bool(compute_weights),
                      alpha=self.alpha, gamma=self.gamma)

        if self.reduction not in ("mean", "sum"):
            out = pl.pallas_call(
                functools.partial(_wbce_tile_kernel, **static),
                out_shape=jax.ShapeDtypeStruct((bf_pad, GL), logits.dtype),
                grid=(num_tiles,),
                in_specs=[pl.BlockSpec((tbf, GL), lambda i: (i, 0)),
                          pl.BlockSpec((tbf, G), lambda i: (i, 0))],
                out_specs=pl.BlockSpec((tbf, GL), lambda i: (i, 0)),
                compiler_params=pltpu.CompilerParams(
                    dimension_semantics=("parallel",)),
            )(x_f, t_f)
            result = out.reshape(b_pad, L)
            if b_pad != B:
                result = result[:B]
            return result

        # Fused mean/sum: accumulate into a grid-resident (1,1) output block.
        out = pl.pallas_call(
            functools.partial(_wbce_sum_kernel, n_valid_rows=B, **static),
            out_shape=jax.ShapeDtypeStruct((1, 1), jnp.float32),
            grid=(num_tiles,),
            in_specs=[pl.BlockSpec((tbf, GL), lambda i: (i, 0)),
                      pl.BlockSpec((tbf, G), lambda i: (i, 0))],
            out_specs=pl.BlockSpec((1, 1), lambda i: (0, 0)),
            compiler_params=pltpu.CompilerParams(
                dimension_semantics=("arbitrary",)),
        )(x_f, t_f)
        total = out[0, 0]
        if self.reduction == "mean":
            total = total / (B * L)
        return total.astype(logits.dtype)


def _reference(logits, target, num_labels, binary_loss_type="bce",
               compute_weights=False, reduction="None", alpha=0.5, gamma=2.0):
    # Pure-JAX reference of the PyTorch forward for verification.
    one_hot = jnp.tril(jnp.ones((num_labels, num_labels), jnp.float32))
    one_hot = jnp.concatenate(
        [jnp.zeros((1, num_labels), jnp.float32), one_hot], axis=0)
    y = one_hot[target, :]
    x = logits.astype(jnp.float32)
    result = jnp.maximum(x, 0.0) - x * y + jnp.log1p(jnp.exp(-jnp.abs(x)))
    if binary_loss_type == "focal":
        pt = jnp.exp(-result)
        result = alpha * (1.0 - pt) ** gamma * result
    if compute_weights:
        est = jnp.sum((x > 0.0).astype(jnp.int32), axis=1)
        err = jnp.abs(est - target.astype(jnp.int32))
        w = jnp.minimum(err + 1, 7).astype(jnp.float32)
        result = w[:, None] * result
    if reduction == "mean":
        result = jnp.mean(result)
    elif reduction == "sum":
        result = jnp.sum(result)
    return result


if __name__ == "__main__":
    B, L = 8, 32  # batch=8, num_labels=32
    key = jax.random.PRNGKey(0)
    k1, k2 = jax.random.split(key)
    logits = jax.random.normal(k1, (B, L), dtype=jnp.float32)
    target = jax.random.randint(k2, (B,), 0, L + 1, dtype=jnp.int32)

    # Default path: BCE, reduction='None'.
    loss_fn = WeightedBinaryCrossEntropyLoss(num_labels=L, reduction="None",
                                             binary_loss_type="BCE")
    out = jax.block_until_ready(loss_fn(logits, target))
    ref = _reference(logits, target, L, "bce", False, "None")
    assert out.shape == (B, L)
    assert jnp.allclose(out, ref, atol=1e-5, rtol=1e-5)

    # compute_weights path.
    out_w = jax.block_until_ready(loss_fn(logits, target, compute_weights=True))
    ref_w = _reference(logits, target, L, "bce", True, "None")
    assert jnp.allclose(out_w, ref_w, atol=1e-5, rtol=1e-5)

    # Focal path (gamma == 2 fast path).
    focal_fn = WeightedBinaryCrossEntropyLoss(num_labels=L, reduction="None",
                                              binary_loss_type="Focal")
    out_f = jax.block_until_ready(focal_fn(logits, target))
    ref_f = _reference(logits, target, L, "focal", False, "None")
    assert jnp.allclose(out_f, ref_f, atol=1e-5, rtol=1e-5)

    # Fused in-kernel mean reduction path (with weights).
    mean_fn = WeightedBinaryCrossEntropyLoss(num_labels=L, reduction="mean",
                                             binary_loss_type="BCE")
    out_m = jax.block_until_ready(mean_fn(logits, target, compute_weights=True))
    ref_m = _reference(logits, target, L, "bce", True, "mean")
    assert jnp.allclose(out_m, ref_m, atol=1e-5, rtol=1e-5)

    # Fused sum reduction with a batch that needs fold padding (B=50, G=4),
    # exercising the in-kernel padded-row masking.
    k3, k4 = jax.random.split(k2)
    B2 = 50
    logits2 = jax.random.normal(k3, (B2, L), dtype=jnp.float32)
    target2 = jax.random.randint(k4, (B2,), 0, L + 1, dtype=jnp.int32)
    sum_fn = WeightedBinaryCrossEntropyLoss(num_labels=L, reduction="sum",
                                            binary_loss_type="BCE")
    out_s = jax.block_until_ready(sum_fn(logits2, target2))
    ref_s = _reference(logits2, target2, L, "bce", False, "sum")
    assert jnp.allclose(out_s, ref_s, atol=1e-3, rtol=1e-5)

    print("KERNEL_OK")
</pallas_src>

<mosaic_0001>
module attributes {stable_mosaic.version = 11 : i64} {
  func.func @_wbce_tile_kernel(%arg0: i32, %arg1: memref<2x128xf32, #tpu.memory_space<vmem>>, %arg2: memref<2x4xi32, #tpu.memory_space<vmem>>, %arg3: memref<2x128xf32, #tpu.memory_space<vmem>>) attributes {dimension_semantics = [#tpu.dimension_semantics<parallel>], iteration_bounds = array<i64: 1>, scalar_prefetch = 0 : i64, scratch_operands = 0 : i64, tpu.core_type = #tpu.core_type<tc>, window_params = [{transform_indices = @transform_0, window_bounds = array<i64: 2, 128>}, {transform_indices = @transform_1, window_bounds = array<i64: 2, 4>}, {transform_indices = @transform_2, window_bounds = array<i64: 2, 128>}]} {
    %c0 = arith.constant 0 : index
    %c0_0 = arith.constant 0 : index
    %0 = vector.load %arg1[%c0, %c0_0] : memref<2x128xf32, #tpu.memory_space<vmem>>, vector<2x128xf32>
    %c0_1 = arith.constant 0 : index
    %c0_2 = arith.constant 0 : index
    %1 = vector.load %arg2[%c0_1, %c0_2] : memref<2x4xi32, #tpu.memory_space<vmem>>, vector<2x4xi32>
    %2 = arith.sitofp %1 : vector<2x4xi32> to vector<2x4xf32>
    %3 = tpu.iota {dimensions = array<i32: 1>} : vector<2x128xi32>
    %c31_i32 = arith.constant 31 : i32
    %4 = vector.broadcast %c31_i32 : i32 to vector<2x128xi32>
    %5 = arith.andi %3, %4 : vector<2x128xi32>
    %6 = arith.sitofp %5 : vector<2x128xi32> to vector<2x128xf32>
    %7 = tpu.iota {dimensions = array<i32: 0>} : vector<4x128xi32>
    %8 = tpu.iota {dimensions = array<i32: 1>} : vector<4x128xi32>
    %c5_i32 = arith.constant 5 : i32
    %9 = vector.broadcast %c5_i32 : i32 to vector<4x128xi32>
    %10 = arith.shrsi %8, %9 : vector<4x128xi32>
    %11 = arith.cmpi eq, %10, %7 : vector<4x128xi32>
    %cst = arith.constant 1.000000e+00 : f32
    %cst_3 = arith.constant 0.000000e+00 : f32
    %12 = vector.broadcast %cst : f32 to vector<4x128xf32>
    %13 = vector.broadcast %cst_3 : f32 to vector<4x128xf32>
    %14 = arith.select %11, %12, %13 : vector<4x128xi1>, vector<4x128xf32>
    %cst_4 = arith.constant dense<0.000000e+00> : vector<2x128xf32>
    %15 = tpu.matmul %2, %14, %cst_4 {dimension_numbers = #tpu.dot_dimension_numbers<[1], [0], [0], [1], [0, 0, 1, 1], [], []>} : vector<2x4xf32>, vector<4x128xf32>, vector<2x128xf32> -> vector<2x128xf32>
    %16 = arith.cmpf olt, %6, %15 : vector<2x128xf32>
    %cst_5 = arith.constant 1.000000e+00 : f32
    %cst_6 = arith.constant 0.000000e+00 : f32
    %17 = vector.broadcast %cst_5 : f32 to vector<2x128xf32>
    %18 = vector.broadcast %cst_6 : f32 to vector<2x128xf32>
    %19 = arith.select %16, %17, %18 : vector<2x128xi1>, vector<2x128xf32>
    %cst_7 = arith.constant 0.000000e+00 : f32
    %20 = vector.broadcast %cst_7 : f32 to vector<2x128xf32>
    %21 = arith.maximumf %0, %20 : vector<2x128xf32>
    %22 = arith.mulf %0, %19 : vector<2x128xf32>
    %23 = arith.subf %21, %22 : vector<2x128xf32>
    %24 = math.absf %0 : vector<2x128xf32>
    %cst_8 = arith.constant 0.000000e+00 : f32
    %25 = vector.broadcast %cst_8 : f32 to vector<2x128xf32>
    %26 = arith.subf %25, %24 : vector<2x128xf32>
    %27 = math.exp %26 : vector<2x128xf32>
    %28 = math.log1p %27 : vector<2x128xf32>
    %29 = arith.addf %23, %28 : vector<2x128xf32>
    %c0_9 = arith.constant 0 : index
    %c0_10 = arith.constant 0 : index
    %30 = vector.load %arg3[%c0_9, %c0_10] : memref<2x128xf32, #tpu.memory_space<vmem>>, vector<2x128xf32>
    tpu.vector_store %arg3[%c0_9, %c0_10], %29 {strides = array<i32>} : memref<2x128xf32, #tpu.memory_space<vmem>>, vector<2x128xf32>,
    return
  }
  func.func @transform_0(%arg0: i32) -> (i32, i32) {
    %c0_i32 = arith.constant 0 : i32
    %c0_i32_0 = arith.constant 0 : i32
    return %arg0, %c0_i32 : i32, i32
  }
  func.func @transform_1(%arg0: i32) -> (i32, i32) {
    %c0_i32 = arith.constant 0 : i32
    %c0_i32_0 = arith.constant 0 : i32
    return %arg0, %c0_i32 : i32, i32
  }
  func.func @transform_2(%arg0: i32) -> (i32, i32) {
    %c0_i32 = arith.constant 0 : i32
    %c0_i32_0 = arith.constant 0 : i32
    return %arg0, %c0_i32 : i32, i32
  }
}

</mosaic_0001>

<llo_original>
// kernel: tpu_custom_call.1
$region0: #{tpu_custom_call.1}
  #allocation0 [shape = 'u32[]', space=smem, size = 0x4, offset = 0x4, fixed_abs, tag = 'smem constant byte address 0x4 - core index']
  #allocation1 [shape = 'u32[144,128]{1,0:T(1,128)}', space=vmem, size = 0x12000, scoped, tag = 'internal scratch']
  %s0 = inlined_call_operand.hbm [shape: f32[2,128], index: 0, kind: input, shape index: {}]
  %s1 = inlined_call_operand.vmem [shape: s32[2,4], index: 1, kind: input, shape index: {}]
  %s2 = inlined_call_operand.hbm [shape: f32[2,128], index: 2, kind: output, shape index: {}]
  %s3 = sld [smem:[#allocation0]]
  $region22: #{tpu_custom_call.1} parent=0
    _
  %s5 = ssub.s32 1, %s3
  %s6 = scalar_select 0, %s5, %s3
  $region1: #{tpu_custom_call.1} parent=0
    #allocation2 [shape = 'u8[1024]{0}', space=vmem, size = 0x400, scoped, tag = 'input window, operand 0, single buffered']
    #allocation3 [shape = 's32[1]{0}', space=sflag, size = 0x4, scoped, tag = 'scoped memory for tpu_custom_call.1']
    #allocation4 [shape = 's32[1]{0}', space=sflag, size = 0x4, scoped, tag = 'scoped memory for tpu_custom_call.1']
    #allocation5 [shape = 'u8[1024]{0}', space=vmem, size = 0x400, scoped, tag = 'output window, operand 0, single buffered']
    %7 = vsyncpa [#allocation3], 0
    %8 = vsyncpa [#allocation4], 0
    // Predicated region
    $region2: #{tpu_custom_call.1} parent=1 // pred_check
      _
    $region3: #{tpu_custom_call.1} parent=1 // pred_check_branch
      %10 = sbr.rel (0) target = $region5
    $region4: #{tpu_custom_call.1} parent=1 // pred_region
      %s12 = ssub.s32 32, 32
      %13 = vsyncadd [#allocation3], %s12
      %s15 = sshll.u32 [#allocation2], 4
      %s16 = int_to_ptr.vmem [resolvable:$true] %s15
      %18 = dma.hbm_to_vmem [thread:$0]  %s0, 32, %s16, [#allocation3]
    $region5: #{tpu_custom_call.1} parent=1 // pred_fallthru
      _
    // Predicated region
    $region6: #{tpu_custom_call.1} parent=1 // pred_check
      _
    $region7: #{tpu_custom_call.1} parent=1 // pred_check_branch
      %20 = sbr.rel (0) target = $region9
    $region8: #{tpu_custom_call.1} parent=1 // pred_region
      _
    $region9: #{tpu_custom_call.1} parent=1 // pred_fallthru
      _
    // Predicated region
    $region10: #{tpu_custom_call.1} parent=1 // pred_check
      _
    $region11: #{tpu_custom_call.1} parent=1 // pred_check_branch
      %22 = sbr.rel (0) target = $region13
    $region12: #{tpu_custom_call.1} parent=1 // pred_region
      %23 = dma.done [#allocation3], 32
    $region13: #{tpu_custom_call.1} parent=1 // pred_fallthru
      _
    %v24 = vld [vmem:[#allocation2] sm:$0x3]
    %v25 = vld [vmem:[%s1] sm:$0x3]
    %v26 = vcvt.s32.f32 %v25
    %v27 = vlaneseq
    %v28 = vand.u32 %v27, 127
    %v29 = vand.u32 %v28, 31
    %v30 = vcvt.s32.f32 %v29
    %v31 = vlaneseq
    %v32 = vshrl.u32 %v31, 7
    %v33 = vshra.s32 %v28, 5
    %vm34 = vcmp.eq.s32.totalorder %v33, %v32
    %v35 = vsel %vm34, 1.0, 0.0
    %vm36 = vcmask 31744
    %v38 = vsel %vm36, %v26, 0
    %vm40 = vcmask 1043456
    %v42 = vsel %vm40, %v35, 0
    %44 = vmatprep.subr.mxu0 0.0
    %45 = vmatpush1.msra.mxu0 %v42
    %46 = vmatprep.subr.mxu0 0.0
    %47 = vmatpush1.msra.mxu0 0.0
    %48 = vmatprep.subr.mxu0 0.0
    %49 = vmatpush1.msra.mxu0 0.0
    %50 = vmatprep.subr.mxu0 0.0
    %51 = vmatpush1.msra.mxu0 0.0
    %52 = vmatprep.subr.mxu0 0.0
    %53 = vmatpush1.msra.mxu0 0.0
    %54 = vmatprep.subr.mxu0 0.0
    %55 = vmatpush1.msra.mxu0 0.0
    %56 = vmatprep.subr.mxu0 0.0
    %57 = vmatpush1.msra.mxu0 0.0
    %58 = vmatprep.subr.mxu0 0.0
    %59 = vmatpush1.msra.mxu0 0.0
    %60 = vmatprep.subr.mxu0 0.0
    %61 = vmatpush1.msra.mxu0 0.0
    %62 = vmatprep.subr.mxu0 0.0
    %63 = vmatpush1.msra.mxu0 0.0
    %64 = vmatprep.subr.mxu0 0.0
    %65 = vmatpush1.msra.mxu0 0.0
    %66 = vmatprep.subr.mxu0 0.0
    %67 = vmatpush1.msra.mxu0 0.0
    %68 = vmatprep.subr.mxu0 0.0
    %69 = vmatpush1.msra.mxu0 0.0
    %70 = vmatprep.subr.mxu0 0.0
    %71 = vmatpush1.msra.mxu0 0.0
    %72 = vmatprep.subr.mxu0 0.0
    %73 = vmatpush1.msra.mxu0 0.0
    %74 = vmatprep.subr.mxu0 0.0
    %75 = vmatpush1.msra.mxu0 0.0
    %76 = vmatprep.subr.mxu0 0.0
    %77 = vmatpush1.msra.mxu0 0.0
    %78 = vmatprep.subr.mxu0 0.0
    %79 = vmatpush1.msra.mxu0 0.0
    %80 = vmatprep.subr.mxu0 0.0
    %81 = vmatpush1.msra.mxu0 0.0
    %82 = vmatprep.subr.mxu0 0.0
    %83 = vmatpush1.msra.mxu0 0.0
    %84 = vmatprep.subr.mxu0 0.0
    %85 = vmatpush1.msra.mxu0 0.0
    %86 = vmatprep.subr.mxu0 0.0
    %87 = vmatpush1.msra.mxu0 0.0
    %88 = vmatprep.subr.mxu0 0.0
    %89 = vmatpush1.msra.mxu0 0.0
    %90 = vmatprep.subr.mxu0 0.0
    %91 = vmatpush1.msra.mxu0 0.0
    %92 = vmatprep.subr.mxu0 0.0
    %93 = vmatpush1.msra.mxu0 0.0
    %94 = vmatprep.subr.mxu0 0.0
    %95 = vmatpush1.msra.mxu0 0.0
    %96 = vmatprep.subr.mxu0 0.0
    %97 = vmatpush1.msra.mxu0 0.0
    %98 = vmatprep.subr.mxu0 0.0
    %99 = vmatpush1.msra.mxu0 0.0
    %100 = vmatprep.subr.mxu0 0.0
    %101 = vmatpush1.msra.mxu0 0.0
    %102 = vmatprep.subr.mxu0 0.0
    %103 = vmatpush1.msra.mxu0 0.0
    %104 = vmatprep.subr.mxu0 0.0
    %105 = vmatpush1.msra.mxu0 0.0
    %106 = vmatprep.subr.mxu0 0.0
    %107 = vmatpush1.msra.mxu0 0.0
    %108 = vmatprep.mubr.f32.mxu0 0.0
    %109 = vmatmul.mubr.f32.gmra.mrb[0].mxu0 %v38
    %v110 = vpop.f32.mrb[0].mxu0
    %v111 = vadd.f32 0.0, %v110
    %v112 = vpop.f32.mrb[0].mxu0
    %113 = vdwg.mxu0
    %vm114 = vcmp.lt.f32.partialorder %v30, %v111
    %v115 = vsel %vm114, 1.0, 0.0
    %v116 = vmax.f32 %v24, 0.0
    %v117 = vmul.f32 %v24, %v115
    %v118 = vsub.f32 %v116, %v117
    %v119 = vand.u32 2147483647, %v24
    %v120 = vsub.f32 0.0, %v119
    %v121 = vmul.f32 %v120, 1.442695
    %v122 = vpow.pop %v121
    %v123 = vadd.f32 %v122, 1.0
    %v124 = vlog2.pop %v123
    %v125 = vmul.f32 %v124, 0.6931472
    %v126 = vmul.f32 -0.5, %v122
    %v127 = vadd.f32 %v126, 1.0
    %v128 = vmul.f32 %v127, %v122
    %v129 = vand.u32 2147483647, %v122
    %vm130 = vcmp.lt.f32.partialorder %v129, 0.0004427343
    %v131 = vsel %vm130, %v128, %v125
    %v132 = vadd.f32 %v118, %v131
    %133 = vst [vmem:[#allocation5] sm:$0x3] %v132
    // Predicated region
    $region14: #{tpu_custom_call.1} parent=1 // pred_check
      _
    $region15: #{tpu_custom_call.1} parent=1 // pred_check_branch
      %135 = sbr.rel (0) target = $region17
    $region16: #{tpu_custom_call.1} parent=1 // pred_region
      %s137 = ssub.s32 32, 32
      %138 = vsyncadd [#allocation4], %s137
      %s140 = sshll.u32 [#allocation5], 4
      %s141 = int_to_ptr.vmem [resolvable:$true] %s140
      %143 = dma.vmem_to_hbm [thread:$0]  %s141, 32, %s2, [#allocation4]
    $region17: #{tpu_custom_call.1} parent=1 // pred_fallthru
      _
    // Predicated region
    $region18: #{tpu_custom_call.1} parent=1 // pred_check
      _
    $region19: #{tpu_custom_call.1} parent=1 // pred_check_branch
      %145 = sbr.rel (0) target = $region21
    $region20: #{tpu_custom_call.1} parent=1 // pred_region
      %146 = dma.done [#allocation4], 32
    $region21: #{tpu_custom_call.1} parent=1 // pred_fallthru
      _
    %147 = vsyncpa [#allocation3], 1
    %148 = vsyncpa [#allocation4], 1

</llo_original>
